<compile_context>
chip_gen: v6e
topology: v6e:2x2x1
jax: 0.10.0
libtpu: 0.0.40
codegen_flags: <defaults>
</compile_context>

<pallas_src>
import functools

import jax
import jax.numpy as jnp
from jax.experimental import pallas as pl
from jax.experimental.pallas import tpu as pltpu

_LANE = 128
_TARGET_BLOCK_BYTES = 2 * 1024 * 1024      # per input per pipeline buffer (raise on v6e/v7x
                                           # together with vmem_limit_bytes if desired)
_UNALIGNED_SLAB_BYTES = 2 * 1024 * 1024    # max per-slab block bytes on the unaligned path


def _cdiv(a, b):
    return -(-a // b)


def _sublane_multiple(*dtypes):
    m = 8
    for dt in dtypes:
        m = max(m, 32 // jnp.dtype(dt).itemsize)
    return m


def _row_cap(max_block_rows, mult, itemsize):
    cap = (_TARGET_BLOCK_BYTES // (_LANE * itemsize)
           if max_block_rows is None else int(max_block_rows))
    return max(mult, (cap // mult) * mult)


def _sq_diff(x, y):
    # sigmoid via one EUP push (tanh identity) instead of exp + reciprocal
    d = 0.5 * jnp.tanh(0.5 * x.astype(jnp.float32)) + 0.5 - y.astype(jnp.float32)
    return d * d


# ---------------------------------------------------------------------------
# Aligned path: arrays viewed as (slabs, rows, 128); channel selection via a
# scalar-prefetch slab table; grid = (chunk, row-block); per-lane partial sums
# accumulated in the resident (1,1,128) output block.
# ---------------------------------------------------------------------------
def _tiled_loss_kernel(slab_tbl_ref, row_tbl_ref, x_ref, y_ref, o_ref, *,
                       r_block, slab_rows, ragged):
    del slab_tbl_ref                                   # only used by index_maps
    p = pl.program_id(0)
    j = pl.program_id(1)

    @pl.when(j == 0)
    def _():
        o_ref[...] = jnp.zeros_like(o_ref)

    sq = _sq_diff(x_ref[...], y_ref[...])              # (1, r_block, 128) f32

    if ragged:
        # valid rows inside this row block (<= 0 for fully out-of-range blocks)
        valid = slab_rows - (row_tbl_ref[p] + j) * r_block

        @pl.when(valid >= r_block)
        def _():
            o_ref[...] += jnp.sum(sq, axis=(0, 1), keepdims=True)

        @pl.when(valid < r_block)
        def _():
            row = jax.lax.broadcasted_iota(jnp.int32, sq.shape, 1)
            o_ref[...] += jnp.sum(jnp.where(row < valid, sq, 0.0),
                                  axis=(0, 1), keepdims=True)
    else:
        o_ref[...] += jnp.sum(sq, axis=(0, 1), keepdims=True)


def _run_tiled(x3, y3, slab_ids, slab_rows, rows_cap):
    num_slabs = len(slab_ids)
    r_block = slab_rows if slab_rows <= rows_cap else rows_cap
    num_rblocks = _cdiv(slab_rows, r_block)
    # give the parallel axis >= 2 points when there is only one slab (v7x megacore)
    splits = 2 if (num_slabs == 1 and num_rblocks >= 2) else 1
    nj = _cdiv(num_rblocks, splits)
    num_chunks = num_slabs * splits
    ragged = (num_rblocks * r_block != slab_rows) or (splits * nj != num_rblocks)

    slab_tbl = jnp.asarray([s for s in slab_ids for _ in range(splits)], jnp.int32)
    row_tbl = jnp.asarray([k * nj for _ in slab_ids for k in range(splits)], jnp.int32)

    last_rb = num_rblocks - 1
    in_spec = pl.BlockSpec(
        (1, r_block, _LANE),
        lambda p, j, st, rt: (st[p], jnp.minimum(rt[p] + j, last_rb), 0))
    out_spec = pl.BlockSpec((1, 1, _LANE), lambda p, j, st, rt: (p, 0, 0))

    partials = pl.pallas_call(
        functools.partial(_tiled_loss_kernel, r_block=r_block,
                          slab_rows=slab_rows, ragged=ragged),
        out_shape=jax.ShapeDtypeStruct((num_chunks, 1, _LANE), jnp.float32),
        grid_spec=pltpu.PrefetchScalarGridSpec(
            num_scalar_prefetch=2,
            grid=(num_chunks, nj),
            in_specs=[in_spec, in_spec],
            out_specs=out_spec),
        compiler_params=pltpu.CompilerParams(
            dimension_semantics=("parallel", "arbitrary")),
    )(slab_tbl, row_tbl, x3, y3)
    return jnp.sum(partials, dtype=jnp.float32)


# ---------------------------------------------------------------------------
# Unaligned path (spatial % 128 != 0): one full slab per grid step, selected via
# the slab table; no wrapper-side gather / pad.
# ---------------------------------------------------------------------------
def _slab_loss_kernel(slab_tbl_ref, x_ref, y_ref, o_ref):
    del slab_tbl_ref
    sq = _sq_diff(x_ref[...], y_ref[...])              # (1, 1, cols) f32
    o_ref[...] = jnp.sum(sq, keepdims=True)            # (1, 1, 1)


def _run_slab_flat(x3, y3, slab_ids):
    num_slabs = len(slab_ids)
    cols = x3.shape[-1]
    slab_tbl = jnp.asarray(slab_ids, jnp.int32)
    in_spec = pl.BlockSpec((1, 1, cols), lambda s, st: (st[s], 0, 0))
    out_spec = pl.BlockSpec((1, 1, 1), lambda s, st: (s, 0, 0))

    partials = pl.pallas_call(
        _slab_loss_kernel,
        out_shape=jax.ShapeDtypeStruct((num_slabs, 1, 1), jnp.float32),
        grid_spec=pltpu.PrefetchScalarGridSpec(
            num_scalar_prefetch=1,
            grid=(num_slabs,),
            in_specs=[in_spec, in_spec],
            out_specs=out_spec),
        compiler_params=pltpu.CompilerParams(
            dimension_semantics=("parallel",)),
    )(slab_tbl, x3, y3)
    return jnp.sum(partials, dtype=jnp.float32)


@functools.partial(jax.jit, static_argnames=("channels", "max_block_rows"))
def loss_wrapper_forward(inputs, target, channels=(0, 2), max_block_rows=None):
    """LossWrapper(MSELoss(), channels=channels, activation=Sigmoid()).forward."""
    shape = inputs.shape
    assert target.shape == shape, "inputs/target must have the same shape"
    b, c = int(shape[0]), int(shape[1])
    spatial = 1
    for d in shape[2:]:
        spatial *= int(d)

    ch = list(range(c)) if channels is None else list(channels)
    num_sel = len(ch)
    full = (num_sel == c) and (sorted(ch) == list(range(c)))
    n_valid = b * num_sel * spatial

    mult = _sublane_multiple(inputs.dtype, target.dtype)
    itemsize = max(jnp.dtype(inputs.dtype).itemsize, jnp.dtype(target.dtype).itemsize)
    rows_cap = _row_cap(max_block_rows, mult, itemsize)

    xi, yt = inputs, target
    if spatial % _LANE != 0:
        slab_cols = c * spatial if full else spatial
        if slab_cols * itemsize <= _UNALIGNED_SLAB_BYTES:
            if full:
                x3 = xi.reshape(b, 1, c * spatial)
                y3 = yt.reshape(b, 1, c * spatial)
                slab_ids = list(range(b))
            else:
                x3 = xi.reshape(b * c, 1, spatial)
                y3 = yt.reshape(b * c, 1, spatial)
                slab_ids = [bi * c + ci for bi in range(b) for ci in ch]
            total = _run_slab_flat(x3, y3, slab_ids)
            return (total / jnp.float32(n_valid)).astype(jnp.float32)
        # Rare: huge AND unaligned spatial. Pad the last dim so the tiled path applies.
        # Pad x with a large negative value (sigmoid -> 0) and y with 0, so the padded
        # tail contributes exactly zero to the sum of squared differences.
        pad = (-spatial) % _LANE
        xi = jnp.pad(xi.reshape(b, c, spatial), ((0, 0), (0, 0), (0, pad)),
                     constant_values=-1e4)
        yt = jnp.pad(yt.reshape(b, c, spatial), ((0, 0), (0, 0), (0, pad)),
                     constant_values=0)
        spatial = spatial + pad

    r = spatial // _LANE
    if full:
        x3 = xi.reshape(1, b * c * r, _LANE)
        y3 = yt.reshape(1, b * c * r, _LANE)
        slab_ids = [0]
        slab_rows = b * c * r
    else:
        x3 = xi.reshape(b * c, r, _LANE)
        y3 = yt.reshape(b * c, r, _LANE)
        slab_ids = [bi * c + ci for bi in range(b) for ci in ch]
        slab_rows = r
    total = _run_tiled(x3, y3, slab_ids, slab_rows, rows_cap)

    # MSELoss(reduction="mean") over the selected-channel elements.
    return (total / jnp.float32(n_valid)).astype(jnp.float32)


def _reference(inputs, target, channels):
    if channels is not None:
        idx = jnp.asarray(channels, dtype=jnp.int32)
        inputs = jnp.take(inputs, idx, axis=1)
        target = jnp.take(target, idx, axis=1)
    p = jax.nn.sigmoid(inputs.astype(jnp.float32))
    return jnp.mean((p - target.astype(jnp.float32)) ** 2)


if __name__ == "__main__":
    key = jax.random.PRNGKey(0)
    ks = jax.random.split(key, 8)

    def check(x, t, channels, max_block_rows=None, tag=""):
        out = jax.block_until_ready(
            loss_wrapper_forward(x, t, channels=channels,
                                 max_block_rows=max_block_rows))
        ref = _reference(x, t, channels)
        assert jnp.allclose(out, ref, rtol=1e-5, atol=2e-6), (tag, out, ref)

    # 1) aligned spatial (H*W multiple of 128), partial channel selection
    x = jax.random.normal(ks[0], (2, 4, 16, 16), jnp.float32)
    t = jax.random.uniform(ks[1], (2, 4, 16, 16), jnp.float32)
    check(x, t, (0, 2), tag="aligned/partial")

    # 2) aligned, all channels (coalesced single-slab view)
    check(x, t, None, tag="aligned/full")

    # 3) unaligned spatial -> per-slab flat kernel (no wrapper take/pad)
    x2 = jax.random.normal(ks[2], (2, 4, 10, 10), jnp.float32)
    t2 = jax.random.uniform(ks[3], (2, 4, 10, 10), jnp.float32)
    check(x2, t2, (0, 2), tag="unaligned/partial")

    # 4) ragged row blocks + 2-way parallel split of a single slab (masking path)
    x3 = jax.random.normal(ks[4], (1, 1, 20, 128), jnp.float32)
    t3 = jax.random.uniform(ks[5], (1, 1, 20, 128), jnp.float32)
    check(x3, t3, None, max_block_rows=8, tag="ragged/split")

    # 5) bf16 inputs, partial channels, ragged row blocks (16-row packing multiple)
    x4 = jax.random.normal(ks[6], (2, 3, 20, 128), jnp.bfloat16)
    t4 = jax.random.uniform(ks[7], (2, 3, 20, 128), jnp.bfloat16)
    check(x4, t4, (0, 2), max_block_rows=8, tag="bf16/ragged")

    print("KERNEL_OK")
</pallas_src>

<mosaic_0001>
module attributes {stable_mosaic.version = 11 : i64} {
  func.func @_tiled_loss_kernel(%arg0: i32, %arg1: i32, %arg2: memref<4xi32, #tpu.memory_space<smem>>, %arg3: memref<4xi32, #tpu.memory_space<smem>>, %arg4: memref<1x2x128xf32, #tpu.memory_space<vmem>>, %arg5: memref<1x2x128xf32, #tpu.memory_space<vmem>>, %arg6: memref<1x1x128xf32, #tpu.memory_space<vmem>>) attributes {dimension_semantics = [#tpu.dimension_semantics<parallel>, #tpu.dimension_semantics<arbitrary>], iteration_bounds = array<i64: 4, 1>, scalar_prefetch = 2 : i64, scratch_operands = 0 : i64, tpu.core_type = #tpu.core_type<tc>, window_params = [{transform_indices = @transform_0, window_bounds = array<i64: 1, 2, 128>}, {transform_indices = @transform_1, window_bounds = array<i64: 1, 2, 128>}, {transform_indices = @transform_2, window_bounds = array<i64: 1, 1, 128>}]} {
    %c0_i32 = arith.constant 0 : i32
    %0 = arith.cmpi eq, %arg1, %c0_i32 : i32
    %1 = arith.extui %0 : i1 to i32
    %c0_i32_0 = arith.constant 0 : i32
    %2 = arith.cmpi ne, %1, %c0_i32_0 : i32
    scf.if %2 {
      %cst_15 = arith.constant 0.000000e+00 : f32
      %19 = vector.broadcast %cst_15 : f32 to vector<1x1x128xf32>
      %c0_16 = arith.constant 0 : index
      %c0_17 = arith.constant 0 : index
      %c0_18 = arith.constant 0 : index
      %20 = vector.load %arg6[%c0_16, %c0_17, %c0_18] : memref<1x1x128xf32, #tpu.memory_space<vmem>>, vector<1x1x128xf32>
      tpu.vector_store %arg6[%c0_16, %c0_17, %c0_18], %19 {strides = array<i32>} : memref<1x1x128xf32, #tpu.memory_space<vmem>>, vector<1x1x128xf32>,
    } else {
    }
    %c0 = arith.constant 0 : index
    %c0_1 = arith.constant 0 : index
    %c0_2 = arith.constant 0 : index
    %3 = vector.load %arg4[%c0, %c0_1, %c0_2] : memref<1x2x128xf32, #tpu.memory_space<vmem>>, vector<1x2x128xf32>
    %c0_3 = arith.constant 0 : index
    %c0_4 = arith.constant 0 : index
    %c0_5 = arith.constant 0 : index
    %4 = vector.load %arg5[%c0_3, %c0_4, %c0_5] : memref<1x2x128xf32, #tpu.memory_space<vmem>>, vector<1x2x128xf32>
    %cst = arith.constant 5.000000e-01 : f32
    %5 = vector.broadcast %cst : f32 to vector<1x2x128xf32>
    %6 = arith.mulf %5, %3 : vector<1x2x128xf32>
    %7 = math.tanh %6 : vector<1x2x128xf32>
    %cst_6 = arith.constant 5.000000e-01 : f32
    %8 = vector.broadcast %cst_6 : f32 to vector<1x2x128xf32>
    %9 = arith.mulf %8, %7 : vector<1x2x128xf32>
    %cst_7 = arith.constant 5.000000e-01 : f32
    %10 = vector.broadcast %cst_7 : f32 to vector<1x2x128xf32>
    %11 = arith.addf %9, %10 : vector<1x2x128xf32>
    %12 = arith.subf %11, %4 : vector<1x2x128xf32>
    %13 = arith.mulf %12, %12 : vector<1x2x128xf32>
    %c0_8 = arith.constant 0 : index
    %c0_9 = arith.constant 0 : index
    %c0_10 = arith.constant 0 : index
    %14 = vector.load %arg6[%c0_8, %c0_9, %c0_10] : memref<1x1x128xf32, #tpu.memory_space<vmem>>, vector<1x1x128xf32>
    %cst_11 = arith.constant dense<0.000000e+00> : vector<128xf32>
    %15 = vector.multi_reduction <add>, %13, %cst_11 [0, 1] : vector<1x2x128xf32> to vector<128xf32>
    %16 = vector.shape_cast %15 : vector<128xf32> to vector<1x1x128xf32>
    %17 = arith.addf %14, %16 : vector<1x1x128xf32>
    %c0_12 = arith.constant 0 : index
    %c0_13 = arith.constant 0 : index
    %c0_14 = arith.constant 0 : index
    %18 = vector.load %arg6[%c0_12, %c0_13, %c0_14] : memref<1x1x128xf32, #tpu.memory_space<vmem>>, vector<1x1x128xf32>
    tpu.vector_store %arg6[%c0_12, %c0_13, %c0_14], %17 {strides = array<i32>} : memref<1x1x128xf32, #tpu.memory_space<vmem>>, vector<1x1x128xf32>,
    return
  }
  func.func @transform_0(%arg0: i32, %arg1: i32, %arg2: memref<4xi32, #tpu.memory_space<smem>>, %arg3: memref<4xi32, #tpu.memory_space<smem>>) -> (i32, i32, i32) {
    %0 = arith.index_cast %arg0 : i32 to index
    %1 = memref.load %arg2[%0] : memref<4xi32, #tpu.memory_space<smem>>
    %2 = arith.index_cast %arg0 : i32 to index
    %3 = memref.load %arg3[%2] : memref<4xi32, #tpu.memory_space<smem>>
    %4 = arith.addi %3, %arg1 : i32
    %c0_i32 = arith.constant 0 : i32
    %5 = arith.minsi %4, %c0_i32 : i32
    %c0_i32_0 = arith.constant 0 : i32
    %c0_i32_1 = arith.constant 0 : i32
    return %1, %5, %c0_i32_0 : i32, i32, i32
  }
  func.func @transform_1(%arg0: i32, %arg1: i32, %arg2: memref<4xi32, #tpu.memory_space<smem>>, %arg3: memref<4xi32, #tpu.memory_space<smem>>) -> (i32, i32, i32) {
    %0 = arith.index_cast %arg0 : i32 to index
    %1 = memref.load %arg2[%0] : memref<4xi32, #tpu.memory_space<smem>>
    %2 = arith.index_cast %arg0 : i32 to index
    %3 = memref.load %arg3[%2] : memref<4xi32, #tpu.memory_space<smem>>
    %4 = arith.addi %3, %arg1 : i32
    %c0_i32 = arith.constant 0 : i32
    %5 = arith.minsi %4, %c0_i32 : i32
    %c0_i32_0 = arith.constant 0 : i32
    %c0_i32_1 = arith.constant 0 : i32
    return %1, %5, %c0_i32_0 : i32, i32, i32
  }
  func.func @transform_2(%arg0: i32, %arg1: i32, %arg2: memref<4xi32, #tpu.memory_space<smem>>, %arg3: memref<4xi32, #tpu.memory_space<smem>>) -> (i32, i32, i32) {
    %c0_i32 = arith.constant 0 : i32
    %c0_i32_0 = arith.constant 0 : i32
    %c0_i32_1 = arith.constant 0 : i32
    return %arg0, %c0_i32, %c0_i32_0 : i32, i32, i32
  }
}

</mosaic_0001>

<llo_original>
// kernel: loss_wrapper_forward.1
$region0: #{loss_wrapper_forward.1}
  #allocation0 [shape = 'u32[]', space=smem, size = 0x4, offset = 0x4, fixed_abs, tag = 'smem constant byte address 0x4 - core index']
  #allocation1 [shape = 'u32[144,128]{1,0:T(1,128)}', space=vmem, size = 0x12000, scoped, tag = 'internal scratch']
  #allocation2 [shape = 's32[1]{0}', space=sflag, size = 0x4, scoped, tag = 'scoped memory for loss_wrapper_forward.1']
  #allocation3 [shape = 'u8[512]{0}', space=smem, size = 0x200, scoped, tag = 'prefetched SMEM operand 0']
  #allocation4 [shape = 'u8[512]{0}', space=smem, size = 0x200, scoped, tag = 'prefetched SMEM operand 1']
  %s0 = inlined_call_operand.vmem [shape: s32[4], index: 0, kind: input, shape index: {}]
  %s1 = inlined_call_operand.vmem [shape: s32[4], index: 1, kind: input, shape index: {}]
  %s2 = inlined_call_operand.vmem [shape: f32[8,2,128], index: 2, kind: input, shape index: {}]
  %s3 = inlined_call_operand.vmem [shape: f32[8,2,128], index: 3, kind: input, shape index: {}]
  %s4 = inlined_call_operand.vmem [shape: f32[4,1,128], index: 4, kind: output, shape index: {}]
  %s5 = sld [smem:[#allocation0]]
  $region45: #{loss_wrapper_forward.1} parent=0
    _
  %s7 = ssub.s32 1, %s5
  %s8 = scalar_select 0, %s7, %s5
  %s9 = sshll.u32 %s0, 4
  %s10 = int_to_ptr.vmem [resolvable:$true] %s9
  %12 = dma.vmem_to_smem %s10, 16, [#allocation3], [#allocation2]
  %s13 = sshll.u32 %s1, 4
  %s14 = int_to_ptr.vmem [resolvable:$true] %s13
  %16 = dma.vmem_to_smem %s14, 16, [#allocation4], [#allocation2]
  %17 = dma.done [#allocation2], 32
  %18 = sfence
  loop: start=0, step=1, limit=6
  $region2: #{loss_wrapper_forward.1} parent=0 // loop_pre_header
    _
  $region3: #{loss_wrapper_forward.1} parent=0 // loop_header
    %s20 = sphi 0, %s24
    %p21 = scmp.ge.s32.totalorder %s20, 6
    %s27 = sphi 0, %s39
    %s28 = sphi 0, %s35
    %s29 = sphi 0, %s27
    %s30 = sphi 0, %s28
    %s31 = sphi 0, %s29
    %s32 = sphi 0, %s30
    %s54 = sphi 0, %s56
    %s57 = sphi 0, %s54
    %s58 = sphi 0, %s57
    %s74 = sphi 0, %s58
    %s92 = sphi 0, %s94
    %s95 = sphi 0, %s92
    %s96 = sphi 0, %s95
    %s112 = sphi 0, %s96
    %s118 = sphi 0, %s120
    %s121 = sphi 0, %s118
    %s122 = sphi 0, %s121
    %s138 = sphi 0, %s122
  $region4: #{loss_wrapper_forward.1} parent=0 // loop_header_branch
    %23 = sbr.rel (%p21) target = $region8
  $region5: #{loss_wrapper_forward.1} parent=0 // loop_body
    %s25 = ssub.s32 %s20, 1
    %s26 = ssub.s32 %s20, 2
    %s33 = sadd.s32 1, %s28
    %p34 = scmp.ge.s32.totalorder %s33, 1
    %s35 = scalar_select %p34, 0, %s33
    %s36 = sadd.s32 1, %s27
    %s37 = scalar_select %p34, %s36, %s27
    %p38 = scmp.ge.s32.totalorder %s37, 4
    %s39 = scalar_select %p38, 0, %s37
    %s40 = sld [smem:[#allocation3 + %s27]]
    %s41 = sld [smem:[#allocation4 + %s27]]
    %s42 = sadd.s32 %s41, %s28
    %p43 = scmp.lt.s32.totalorder %s42, 0
    %s44 = scalar_select %p43, %s42, 0
    %s45 = sld [smem:[#allocation3 + %s39]]
    %s46 = sld [smem:[#allocation4 + %s39]]
    %s47 = sadd.s32 %s46, %s35
    %p48 = scmp.lt.s32.totalorder %s47, 0
    %s49 = scalar_select %p48, %s47, 0
    %s50 = ssub.s32 %s40, %s45
    %s51 = ssub.s32 %s44, %s49
    %s52 = sor.u32 %s50, %s51
    %p53 = scmp.eq.s32.totalorder %s52, 0
    %s55 = sadd.s32 %s54, 1
    %s56 = scalar_select %p53, %s54, %s55
    %p59 = pneg %p53
    %p60 = scmp.eq.s32.totalorder %s20, 3
    %p61 = por %p59, %p60
    %p62 = scmp.ne.s32.totalorder %s54, %s57
    %p63 = scmp.eq.s32.totalorder %s20, 0
    %p64 = por %p62, %p63
    %p65 = scmp.ne.s32.totalorder %s54, %s57
    %p66 = scmp.eq.s32.totalorder %s25, 3
    %p67 = por %p65, %p66
    %p68 = scmp.ne.s32.totalorder %s57, %s58
    %p69 = scmp.eq.s32.totalorder %s25, 0
    %p70 = por %p68, %p69
    %p71 = scmp.ne.s32.totalorder %s57, %s58
    %p72 = scmp.eq.s32.totalorder %s26, 3
    %p73 = por %p71, %p72
    %p75 = scmp.ne.s32.totalorder %s58, %s74
    %p76 = scmp.eq.s32.totalorder %s26, 0
    %p77 = por %p75, %p76
    %s78 = sld [smem:[#allocation3 + %s27]]
    %s79 = sld [smem:[#allocation4 + %s27]]
    %s80 = sadd.s32 %s79, %s28
    %p81 = scmp.lt.s32.totalorder %s80, 0
    %s82 = scalar_select %p81, %s80, 0
    %s83 = sld [smem:[#allocation3 + %s39]]
    %s84 = sld [smem:[#allocation4 + %s39]]
    %s85 = sadd.s32 %s84, %s35
    %p86 = scmp.lt.s32.totalorder %s85, 0
    %s87 = scalar_select %p86, %s85, 0
    %s88 = ssub.s32 %s78, %s83
    %s89 = ssub.s32 %s82, %s87
    %s90 = sor.u32 %s88, %s89
    %p91 = scmp.eq.s32.totalorder %s90, 0
    %s93 = sadd.s32 %s92, 1
    %s94 = scalar_select %p91, %s92, %s93
    %p97 = pneg %p91
    %p98 = scmp.eq.s32.totalorder %s20, 3
    %p99 = por %p97, %p98
    %p100 = scmp.ne.s32.totalorder %s92, %s95
    %p101 = scmp.eq.s32.totalorder %s20, 0
    %p102 = por %p100, %p101
    %p103 = scmp.ne.s32.totalorder %s92, %s95
    %p104 = scmp.eq.s32.totalorder %s25, 3
    %p105 = por %p103, %p104
    %p106 = scmp.ne.s32.totalorder %s95, %s96
    %p107 = scmp.eq.s32.totalorder %s25, 0
    %p108 = por %p106, %p107
    %p109 = scmp.ne.s32.totalorder %s95, %s96
    %p110 = scmp.eq.s32.totalorder %s26, 3
    %p111 = por %p109, %p110
    %p113 = scmp.ne.s32.totalorder %s96, %s112
    %p114 = scmp.eq.s32.totalorder %s26, 0
    %p115 = por %p113, %p114
    %s116 = ssub.s32 %s27, %s39
    %p117 = scmp.eq.s32.totalorder %s116, 0
    %s119 = sadd.s32 %s118, 1
    %s120 = scalar_select %p117, %s118, %s119
    %p123 = pneg %p117
    %p124 = scmp.eq.s32.totalorder %s20, 3
    %p125 = por %p123, %p124
    %p126 = scmp.ne.s32.totalorder %s118, %s121
    %p127 = scmp.eq.s32.totalorder %s20, 0
    %p128 = por %p126, %p127
    %p129 = scmp.ne.s32.totalorder %s118, %s121
    %p130 = scmp.eq.s32.totalorder %s25, 3
    %p131 = por %p129, %p130
    %p132 = scmp.ne.s32.totalorder %s121, %s122
    %p133 = scmp.eq.s32.totalorder %s25, 0
    %p134 = por %p132, %p133
    %p135 = scmp.ne.s32.totalorder %s121, %s122
    %p136 = scmp.eq.s32.totalorder %s26, 3
    %p137 = por %p135, %p136
    %p139 = scmp.ne.s32.totalorder %s122, %s138
    %p140 = scmp.eq.s32.totalorder %s26, 0
    %p141 = por %p139, %p140
    %p142 = scmp.le.s32.totalorder 1, %s20
    %p143 = scmp.lt.s32.totalorder %s20, 5
    %p144 = pnand %p142, %p143
    %p145 = pneg %p144
    // Predicated region
    $region9: #{loss_wrapper_forward.1} parent=5 // pred_check
      _
    $region10: #{loss_wrapper_forward.1} parent=5 // pred_check_branch
      %147 = sbr.rel (%p144) target = $region12
    $region11: #{loss_wrapper_forward.1} parent=5 // pred_region
      %s148 = ssub.s32 %s20, 1
    $region12: #{loss_wrapper_forward.1} parent=5 // pred_fallthru
      _
    %p149 = scmp.lt.s32.totalorder %s20, 4
    // Predicated region
    $region13: #{loss_wrapper_forward.1} parent=5 // pred_check
      %p150 = pneg %p149
    $region14: #{loss_wrapper_forward.1} parent=5 // pred_check_branch
      %152 = sbr.rel (%p150) target = $region16
    $region15: #{loss_wrapper_forward.1} parent=5 // pred_region
      // Predicated region
      $region17: #{loss_wrapper_forward.1} parent=15 // pred_check
        %p153 = pneg %p64
      $region18: #{loss_wrapper_forward.1} parent=15 // pred_check_branch
        %155 = sbr.rel (%p153) target = $region20
      $region19: #{loss_wrapper_forward.1} parent=15 // pred_region
        %s156 = sld [smem:[#allocation3 + %s27]]
        %s157 = sld [smem:[#allocation4 + %s27]]
        %s158 = sadd.s32 %s157, %s28
        %p159 = scmp.lt.s32.totalorder %s158, 0
        %s160 = scalar_select %p159, %s158, 0
        %p161 = scmp.lt.s32.totalorder %s156, 7
        %s162 = scalar_select %p161, %s156, 7
        %p163 = scmp.lt.s32.totalorder %s160, 0
        %s164 = scalar_select %p163, %s160, 0
        %s165 = sadd.s32 %s164, %s162
        %s166 = smul.addr %s165, 2
        %s167 = scalar_lea.vmem %s2, %s166
        %s168 = sld [smem:[#allocation3 + %s27]]
        %s169 = sld [smem:[#allocation4 + %s27]]
        %s170 = sadd.s32 %s169, %s28
        %p171 = scmp.lt.s32.totalorder %s170, 0
        %s172 = scalar_select %p171, %s170, 0
      $region20: #{loss_wrapper_forward.1} parent=15 // pred_fallthru
        _
      // Predicated region
      $region21: #{loss_wrapper_forward.1} parent=15 // pred_check
        %p173 = pneg %p102
      $region22: #{loss_wrapper_forward.1} parent=15 // pred_check_branch
        %175 = sbr.rel (%p173) target = $region24
      $region23: #{loss_wrapper_forward.1} parent=15 // pred_region
        %s176 = sld [smem:[#allocation3 + %s27]]
        %s177 = sld [smem:[#allocation4 + %s27]]
        %s178 = sadd.s32 %s177, %s28
        %p179 = scmp.lt.s32.totalorder %s178, 0
        %s180 = scalar_select %p179, %s178, 0
        %p181 = scmp.lt.s32.totalorder %s176, 7
        %s182 = scalar_select %p181, %s176, 7
        %p183 = scmp.lt.s32.totalorder %s180, 0
        %s184 = scalar_select %p183, %s180, 0
        %s185 = sadd.s32 %s184, %s182
        %s186 = smul.addr %s185, 2
        %s187 = scalar_lea.vmem %s3, %s186
        %s188 = sld [smem:[#allocation3 + %s27]]
        %s189 = sld [smem:[#allocation4 + %s27]]
        %s190 = sadd.s32 %s189, %s28
        %p191 = scmp.lt.s32.totalorder %s190, 0
        %s192 = scalar_select %p191, %s190, 0
      $region24: #{loss_wrapper_forward.1} parent=15 // pred_fallthru
        _
    $region16: #{loss_wrapper_forward.1} parent=5 // pred_fallthru
      _
    %p193 = scmp.le.s32.totalorder 1, %s20
    %p194 = scmp.lt.s32.totalorder %s20, 5
    %p195 = pnand %p193, %p194
    %p196 = pneg %p195
    // Predicated region
    $region25: #{loss_wrapper_forward.1} parent=5 // pred_check
      _
    $region26: #{loss_wrapper_forward.1} parent=5 // pred_check_branch
      %198 = sbr.rel (%p195) target = $region28
    $region27: #{loss_wrapper_forward.1} parent=5 // pred_region
      %s199 = ssub.s32 %s20, 1
      %s200 = sld [smem:[#allocation3 + %s29]]
      %s201 = sld [smem:[#allocation4 + %s29]]
      %s202 = sadd.s32 %s201, %s30
      %p203 = scmp.lt.s32.totalorder %s202, 0
      %s204 = scalar_select %p203, %s202, 0
      %p205 = scmp.lt.s32.totalorder %s200, 7
      %s206 = scalar_select %p205, %s200, 7
      %p207 = scmp.lt.s32.totalorder %s204, 0
      %s208 = scalar_select %p207, %s204, 0
      %s209 = sadd.s32 %s208, %s206
      %s210 = smul.addr %s209, 2
      %s211 = scalar_lea.vmem %s2, %s210
      %p212 = pneg %p70
      %p213 = pneg %p67
      %s214 = sld [smem:[#allocation3 + %s29]]
      %s215 = sld [smem:[#allocation4 + %s29]]
      %s216 = sadd.s32 %s215, %s30
      %p217 = scmp.lt.s32.totalorder %s216, 0
      %s218 = scalar_select %p217, %s216, 0
      %p219 = scmp.lt.s32.totalorder %s214, 7
      %s220 = scalar_select %p219, %s214, 7
      %p221 = scmp.lt.s32.totalorder %s218, 0
      %s222 = scalar_select %p221, %s218, 0
      %s223 = sadd.s32 %s222, %s220
      %s224 = smul.addr %s223, 2
      %s225 = scalar_lea.vmem %s3, %s224
      %p226 = pneg %p108
      %p227 = pneg %p105
      %p228 = pneg %p134
      %p229 = pneg %p131
      %p230 = scmp.lt.s32.totalorder %s29, 3
      %s231 = scalar_select %p230, %s29, 3
      %s232 = scalar_lea.vmem %s4, %s231
      %s233 = sld [smem:[#allocation3 + %s29]]
      %s234 = sld [smem:[#allocation4 + %s29]]
      %s235 = sadd.s32 %s234, %s30
      %p236 = scmp.lt.s32.totalorder %s235, 0
      %s237 = scalar_select %p236, %s235, 0
      %p238 = scmp.lt.s32.totalorder %s233, 7
      %s239 = scalar_select %p238, %s233, 7
      %p240 = scmp.lt.s32.totalorder %s237, 0
      %s241 = scalar_select %p240, %s237, 0
      %s242 = sadd.s32 %s241, %s239
      %s243 = smul.addr %s242, 2
      %s244 = scalar_lea.vmem %s2, %s243
      %s245 = sld [smem:[#allocation3 + %s29]]
      %s246 = sld [smem:[#allocation4 + %s29]]
      %s247 = sadd.s32 %s246, %s30
      %p248 = scmp.lt.s32.totalorder %s247, 0
      %s249 = scalar_select %p248, %s247, 0
      %s250 = sld [smem:[#allocation3 + %s29]]
      %s251 = sld [smem:[#allocation4 + %s29]]
      %s252 = sadd.s32 %s251, %s30
      %p253 = scmp.lt.s32.totalorder %s252, 0
      %s254 = scalar_select %p253, %s252, 0
      %p255 = scmp.lt.s32.totalorder %s250, 7
      %s256 = scalar_select %p255, %s250, 7
      %p257 = scmp.lt.s32.totalorder %s254, 0
      %s258 = scalar_select %p257, %s254, 0
      %s259 = sadd.s32 %s258, %s256
      %s260 = smul.addr %s259, 2
      %s261 = scalar_lea.vmem %s3, %s260
      %s262 = sld [smem:[#allocation3 + %s29]]
      %s263 = sld [smem:[#allocation4 + %s29]]
      %s264 = sadd.s32 %s263, %s30
      %p265 = scmp.lt.s32.totalorder %s264, 0
      %s266 = scalar_select %p265, %s264, 0
      %p267 = scmp.lt.s32.totalorder %s29, 3
      %s268 = scalar_select %p267, %s29, 3
      %s269 = scalar_lea.vmem %s4, %s268
      %p270 = scmp.eq.s32.totalorder %s30, 0
      // Predicated region
      $region29: #{loss_wrapper_forward.1} parent=27 // pred_check
        %p271 = pneg %p270
      $region30: #{loss_wrapper_forward.1} parent=27 // pred_check_branch
        %273 = sbr.rel (%p271) target = $region32
      $region31: #{loss_wrapper_forward.1} parent=27 // pred_region
        %274 = vst [vmem:[%s269] sm:$0x1] 0.0
      $region32: #{loss_wrapper_forward.1} parent=27 // pred_fallthru
        _
      %v275 = vld [vmem:[%s244] sm:$0x3]
      %v276 = vld [vmem:[%s261] sm:$0x3]
      %v277 = vmul.f32 %v275, 0.5
      %v278 = vtanh.pop %v277
      %v279 = vmul.f32 %v278, 0.5
      %v280 = vadd.f32 %v279, 0.5
      %v281 = vsub.f32 %v280, %v276
      %v282 = vmul.f32 %v281, %v281
      %v283 = vld [vmem:[%s269] sm:$0x1]
      %vm284 = vcmask 1041408
      %v285 = vsel %vm284, %v282, 0.0
      %v286 = vrot.slane %v285, 4
      %v287 = vadd.f32 %v285, %v286
      %v288 = vrot.slane %v287, 2
      %v289 = vadd.f32 %v287, %v288
      %v290 = vrot.slane %v289, 1
      %v291 = vadd.f32 %v289, %v290
      %v292 = vadd.f32 %v283, %v291
      %293 = vst [vmem:[%s269] sm:$0x1] %v292
      %p294 = scmp.lt.s32.totalorder %s29, 3
      %s295 = scalar_select %p294, %s29, 3
      %s296 = scalar_lea.vmem %s4, %s295
      // Predicated region
      $region33: #{loss_wrapper_forward.1} parent=27 // pred_check
        %p297 = pneg %p131
      $region34: #{loss_wrapper_forward.1} parent=27 // pred_check_branch
        %299 = sbr.rel (%p297) target = $region36
      $region35: #{loss_wrapper_forward.1} parent=27 // pred_region
        _
      $region36: #{loss_wrapper_forward.1} parent=27 // pred_fallthru
        _
    $region28: #{loss_wrapper_forward.1} parent=5 // pred_fallthru
      _
    %p300 = scmp.le.s32.totalorder 2, %s20
    // Predicated region
    $region37: #{loss_wrapper_forward.1} parent=5 // pred_check
      %p301 = pneg %p300
    $region38: #{loss_wrapper_forward.1} parent=5 // pred_check_branch
      %303 = sbr.rel (%p301) target = $region40
    $region39: #{loss_wrapper_forward.1} parent=5 // pred_region
      %s304 = ssub.s32 %s20, 2
      // Predicated region
      $region41: #{loss_wrapper_forward.1} parent=39 // pred_check
        %p305 = pneg %p137
      $region42: #{loss_wrapper_forward.1} parent=39 // pred_check_branch
        %307 = sbr.rel (%p305) target = $region44
      $region43: #{loss_wrapper_forward.1} parent=39 // pred_region
        %p308 = scmp.lt.s32.totalorder %s31, 3
        %s309 = scalar_select %p308, %s31, 3
        %s310 = scalar_lea.vmem %s4, %s309
      $region44: #{loss_wrapper_forward.1} parent=39 // pred_fallthru
        _
    $region40: #{loss_wrapper_forward.1} parent=5 // pred_fallthru
      _
  $region6: #{loss_wrapper_forward.1} parent=0 // loop_footer
    %s24 = sadd.s32 1, %s20
  $region7: #{loss_wrapper_forward.1} parent=0 // loop_footer_branch
    %19 = sbr.rel target = $region3
  $region8: #{loss_wrapper_forward.1} parent=0 // loop_exit
    _

</llo_original>
